<compile_context>
chip_gen: v6e
topology: v6e:2x2x1
jax: 0.10.0
libtpu: 0.0.40
codegen_flags: <defaults>
</compile_context>

<pallas_src>
import functools

import jax
import jax.numpy as jnp
from jax.experimental import pallas as pl
from jax.experimental.pallas import tpu as pltpu


_TM_CAP = 512                      # M-axis (sublane) tile cap
_TK_CAP = 1024                     # contraction (K) tile cap
_TN_CAP = 1024                     # output lane (N) tile cap
_VMEM_LIMIT = 48 * 1024 * 1024     # safe on v5e/v6e (128 MiB) and v7x (64 MiB)


def _round_up(x, m):
    return ((x + m - 1) // m) * m


def _sublane(dtype):
    isz = jnp.dtype(dtype).itemsize
    return 8 if isz >= 4 else (16 if isz == 2 else 32)


def _choose_tile(dim, gran, cap):
    """Pick (tile, padded_dim): tile is a multiple of `gran`, <= cap, and
    padded_dim is a multiple of tile.  Pads only to hardware granularity when
    the whole (padded) dim fits in one tile; otherwise prefers the largest tile
    whose extra padding is <= ~6%, falling back to the least-padding tile."""
    dim_p = _round_up(dim, gran)
    if dim_p <= cap:
        return dim_p, dim_p                          # single block, minimal pad
    best_t, best_pad = gran, _round_up(dim_p, gran)
    for t in range(cap, gran - 1, -gran):            # largest tile first
        pad = _round_up(dim_p, t)
        if (pad - dim_p) * 16 <= dim_p:              # <= 6.25% waste: take it
            return t, pad
        if pad < best_pad:
            best_t, best_pad = t, pad
    return best_t, best_pad


def _linear_kernel(x_ref, wT_ref, b_ref, o_ref, acc_ref):
    # x_ref: [tm, tk]  wT_ref: [tk, tn]  b_ref: [1, tn] (f32)
    # o_ref: [tm, tn]  acc_ref: [tm, tn] f32 scratch, resident across K steps.
    k = pl.program_id(2)

    @pl.when(k == 0)
    def _init():
        acc_ref[...] = jnp.zeros_like(acc_ref)

    acc_ref[...] += jnp.dot(x_ref[...], wT_ref[...],
                            preferred_element_type=jnp.float32)

    @pl.when(k == pl.num_programs(2) - 1)
    def _finalize():
        o_ref[...] = (acc_ref[...] + b_ref[...]).astype(o_ref.dtype)


def init_xavier_linear_params(key, d_in, d_out, dtype=jnp.float32):
    """Matches XavierLinear.__init__: weight ~ xavier_normal (symmetric under
    transpose, so we directly sample wT = [d_in, d_out]); bias ~ nn.Linear
    default U(-1/sqrt(d_in), 1/sqrt(d_in))."""
    kw, kb = jax.random.split(key)
    std = (2.0 / (d_in + d_out)) ** 0.5
    wT = std * jax.random.normal(kw, (d_in, d_out), dtype=dtype)
    bound = 1.0 / (d_in ** 0.5)
    bias = jax.random.uniform(kb, (d_out,), dtype=dtype,
                              minval=-bound, maxval=bound)
    return wT, bias


def prepare_params(wT, bias, *, compute_dtype=None):
    """ONE-TIME prep (init time, not per forward call): choose K/N tiles, zero
    pad weight/bias to tile multiples, optionally cast the weight to the MXU
    compute dtype.  Returns the dict consumed by xavier_linear()."""
    d_in, d_out = wT.shape
    tk, Kp = _choose_tile(d_in, 128, _TK_CAP)
    tn, Np = _choose_tile(d_out, 128, _TN_CAP)
    if compute_dtype is not None:
        wT = wT.astype(compute_dtype)
    if (Kp, Np) != (d_in, d_out):
        # Explicit zero padding (exact: padded K rows / N cols contribute 0).
        wT = jnp.pad(wT, ((0, Kp - d_in), (0, Np - d_out)))
    b2d = bias.astype(jnp.float32).reshape(1, d_out)
    if Np != d_out:
        b2d = jnp.pad(b2d, ((0, 0), (0, Np - d_out)))
    return {
        "wT": wT, "bias": b2d,
        "d_in": d_in, "d_out": d_out,
        "Kp": Kp, "Np": Np, "tk": tk, "tn": tn,
        "compute_dtype": compute_dtype,
    }


@functools.partial(
    jax.jit,
    static_argnames=("d_in", "d_out", "Kp", "Np", "tk", "tn", "compute_dtype"))
def _forward(x, wT_p, b2d, *, d_in, d_out, Kp, Np, tk, tn, compute_dtype):
    out_dtype = x.dtype
    lead = x.shape[:-1]
    M = 1
    for s in lead:
        M *= s
    x2d = x.reshape(M, d_in)
    if compute_dtype is not None:
        x2d = x2d.astype(compute_dtype)

    # Sublane granularity for the M axis: must satisfy both the x tile and the
    # output tile dtypes.
    sub = max(_sublane(x2d.dtype), _sublane(out_dtype))

    # Choose tm.  If there is only one N block, make sure M splits into >= 2
    # blocks so both v7x TensorCores get work (harmless on single-TC v5e/v6e).
    tm_cap = _TM_CAP
    Mp0 = _round_up(M, sub)
    if Np <= tn and Mp0 > sub:
        tm_cap = min(tm_cap, _round_up((Mp0 + 1) // 2, sub))
    tm, Mp = _choose_tile(M, sub, tm_cap)

    # Per-call padding: only x, and only where actually needed (weight/bias
    # were padded once at init).
    if (Mp, Kp) != (M, d_in):
        x2d = jnp.pad(x2d, ((0, Mp - M), (0, Kp - d_in)))

    grid = (Mp // tm, Np // tn, Kp // tk)

    # Advisory cost estimate (actual HBM traffic incl. re-reads across tiles).
    x_bytes = Mp * Kp * jnp.dtype(x2d.dtype).itemsize * (Np // tn)
    w_bytes = Kp * Np * jnp.dtype(wT_p.dtype).itemsize * (Mp // tm)
    o_bytes = Mp * Np * jnp.dtype(out_dtype).itemsize
    cost = pl.CostEstimate(flops=2 * Mp * Kp * Np, transcendentals=0,
                           bytes_accessed=x_bytes + w_bytes + o_bytes)

    out = pl.pallas_call(
        _linear_kernel,
        out_shape=jax.ShapeDtypeStruct((Mp, Np), out_dtype),
        grid_spec=pltpu.PrefetchScalarGridSpec(
            num_scalar_prefetch=0,
            grid=grid,
            in_specs=[
                pl.BlockSpec((tm, tk), lambda i, j, k: (i, k)),
                pl.BlockSpec((tk, tn), lambda i, j, k: (k, j)),
                pl.BlockSpec((1, tn), lambda i, j, k: (0, j)),
            ],
            out_specs=pl.BlockSpec((tm, tn), lambda i, j, k: (i, j)),
            scratch_shapes=[pltpu.VMEM((tm, tn), jnp.float32)],
        ),
        compiler_params=pltpu.CompilerParams(
            dimension_semantics=("parallel", "parallel", "arbitrary"),
            vmem_limit_bytes=_VMEM_LIMIT,
        ),
        cost_estimate=cost,
    )(x2d, wT_p, b2d)

    if (Mp, Np) != (M, d_out):
        out = out[:M, :d_out]
    return out.reshape(*lead, d_out)


def xavier_linear(x, params):
    """y = x @ wT + bias for x of shape [..., d_in] -> [..., d_out]."""
    return _forward(
        x, params["wT"], params["bias"],
        d_in=params["d_in"], d_out=params["d_out"],
        Kp=params["Kp"], Np=params["Np"],
        tk=params["tk"], tn=params["tn"],
        compute_dtype=params["compute_dtype"])


if __name__ == "__main__":
    key = jax.random.PRNGKey(0)
    k_x, k_p, k_x2, k_p2, k_x3, k_p3 = jax.random.split(key, 6)

    # Test 1: typical module usage [batch, seq, d_in] -> [batch, seq, d_out].
    batch, seq, d_in, d_out = 2, 8, 32, 64
    x = jax.random.normal(k_x, (batch, seq, d_in), dtype=jnp.float32)
    wT, bias = init_xavier_linear_params(k_p, d_in, d_out)
    params = prepare_params(wT, bias)
    y = xavier_linear(x, params)
    jax.block_until_ready(y)
    y_ref = x @ wT + bias
    assert y.shape == (batch, seq, d_out)
    assert jnp.allclose(y, y_ref, atol=1e-5, rtol=1e-5)

    # Test 2: awkward shape from the perf review (K=640 must not be padded to
    # 1024); also exercises multiple M blocks.
    M2, d_in2, d_out2 = 320, 640, 384
    x2 = jax.random.normal(k_x2, (M2, d_in2), dtype=jnp.float32)
    wT2, bias2 = init_xavier_linear_params(k_p2, d_in2, d_out2)
    params2 = prepare_params(wT2, bias2)
    assert params2["Kp"] == 640 and params2["Np"] == 384  # no tile-size padding
    y2 = xavier_linear(x2, params2)
    jax.block_until_ready(y2)
    y2_ref = x2 @ wT2 + bias2
    assert y2.shape == (M2, d_out2)
    assert jnp.allclose(y2, y2_ref, atol=5e-3, rtol=5e-3)

    # Test 3: optional bf16 MXU compute path (f32 accumulation).
    b3, s3, d_in3, d_out3 = 4, 64, 512, 256
    x3 = jax.random.normal(k_x3, (b3, s3, d_in3), dtype=jnp.float32)
    wT3, bias3 = init_xavier_linear_params(k_p3, d_in3, d_out3)
    params3 = prepare_params(wT3, bias3, compute_dtype=jnp.bfloat16)
    y3 = xavier_linear(x3, params3)
    jax.block_until_ready(y3)
    y3_ref = (jnp.dot(x3.astype(jnp.bfloat16), wT3.astype(jnp.bfloat16),
                      preferred_element_type=jnp.float32)
              + bias3.astype(jnp.float32)).astype(jnp.float32)
    assert y3.shape == (b3, s3, d_out3)
    assert jnp.allclose(y3, y3_ref, atol=2e-2, rtol=2e-2)

    print("KERNEL_OK")
</pallas_src>

<mosaic_0001>
module attributes {stable_mosaic.version = 11 : i64} {
  func.func @_linear_kernel(%arg0: i32, %arg1: i32, %arg2: i32, %arg3: memref<8x128xf32, #tpu.memory_space<vmem>>, %arg4: memref<128x128xf32, #tpu.memory_space<vmem>>, %arg5: memref<1x128xf32, #tpu.memory_space<vmem>>, %arg6: memref<8x128xf32, #tpu.memory_space<vmem>>, %arg7: memref<8x128xf32, #tpu.memory_space<vmem>>) attributes {dimension_semantics = [#tpu.dimension_semantics<parallel>, #tpu.dimension_semantics<parallel>, #tpu.dimension_semantics<arbitrary>], iteration_bounds = array<i64: 2, 1, 1>, scalar_prefetch = 0 : i64, scratch_operands = 1 : i64, tpu.core_type = #tpu.core_type<tc>, window_params = [{transform_indices = @transform_0, window_bounds = array<i64: 8, 128>}, {transform_indices = @transform_1, window_bounds = array<i64: 128, 128>}, {transform_indices = @transform_2, window_bounds = array<i64: 1, 128>}, {transform_indices = @transform_3, window_bounds = array<i64: 8, 128>}]} {
    %c0_i32 = arith.constant 0 : i32
    %0 = arith.cmpi eq, %arg2, %c0_i32 : i32
    %1 = arith.extui %0 : i1 to i32
    %c0_i32_0 = arith.constant 0 : i32
    %2 = arith.cmpi ne, %1, %c0_i32_0 : i32
    scf.if %2 {
      %cst_10 = arith.constant 0.000000e+00 : f32
      %12 = vector.broadcast %cst_10 : f32 to vector<8x128xf32>
      %c0_11 = arith.constant 0 : index
      %c0_12 = arith.constant 0 : index
      %13 = vector.load %arg7[%c0_11, %c0_12] : memref<8x128xf32, #tpu.memory_space<vmem>>, vector<8x128xf32>
      tpu.vector_store %arg7[%c0_11, %c0_12], %12 {strides = array<i32>} : memref<8x128xf32, #tpu.memory_space<vmem>>, vector<8x128xf32>,
    } else {
    }
    %c0 = arith.constant 0 : index
    %c0_1 = arith.constant 0 : index
    %3 = vector.load %arg7[%c0, %c0_1] : memref<8x128xf32, #tpu.memory_space<vmem>>, vector<8x128xf32>
    %c0_2 = arith.constant 0 : index
    %c0_3 = arith.constant 0 : index
    %4 = vector.load %arg3[%c0_2, %c0_3] : memref<8x128xf32, #tpu.memory_space<vmem>>, vector<8x128xf32>
    %c0_4 = arith.constant 0 : index
    %c0_5 = arith.constant 0 : index
    %5 = vector.load %arg4[%c0_4, %c0_5] : memref<128x128xf32, #tpu.memory_space<vmem>>, vector<128x128xf32>
    %cst = arith.constant dense<0.000000e+00> : vector<8x128xf32>
    %6 = tpu.matmul %4, %5, %cst {dimension_numbers = #tpu.dot_dimension_numbers<[1], [0], [0], [1], [0, 0, 1, 1], [], []>} : vector<8x128xf32>, vector<128x128xf32>, vector<8x128xf32> -> vector<8x128xf32>
    %7 = arith.addf %3, %6 : vector<8x128xf32>
    %c0_6 = arith.constant 0 : index
    %c0_7 = arith.constant 0 : index
    %8 = vector.load %arg7[%c0_6, %c0_7] : memref<8x128xf32, #tpu.memory_space<vmem>>, vector<8x128xf32>
    tpu.vector_store %arg7[%c0_6, %c0_7], %7 {strides = array<i32>} : memref<8x128xf32, #tpu.memory_space<vmem>>, vector<8x128xf32>,
    %c0_i32_8 = arith.constant 0 : i32
    %9 = arith.cmpi eq, %arg2, %c0_i32_8 : i32
    %10 = arith.extui %9 : i1 to i32
    %c0_i32_9 = arith.constant 0 : i32
    %11 = arith.cmpi ne, %10, %c0_i32_9 : i32
    scf.if %11 {
      %c0_10 = arith.constant 0 : index
      %c0_11 = arith.constant 0 : index
      %12 = vector.load %arg7[%c0_10, %c0_11] : memref<8x128xf32, #tpu.memory_space<vmem>>, vector<8x128xf32>
      %c0_12 = arith.constant 0 : index
      %c0_13 = arith.constant 0 : index
      %13 = vector.load %arg5[%c0_12, %c0_13] : memref<1x128xf32, #tpu.memory_space<vmem>>, vector<1x128xf32>
      %14 = vector.broadcast %13 : vector<1x128xf32> to vector<8x128xf32>
      %15 = arith.addf %12, %14 : vector<8x128xf32>
      %c0_14 = arith.constant 0 : index
      %c0_15 = arith.constant 0 : index
      %16 = vector.load %arg6[%c0_14, %c0_15] : memref<8x128xf32, #tpu.memory_space<vmem>>, vector<8x128xf32>
      tpu.vector_store %arg6[%c0_14, %c0_15], %15 {strides = array<i32>} : memref<8x128xf32, #tpu.memory_space<vmem>>, vector<8x128xf32>,
    } else {
    }
    return
  }
  func.func @transform_0(%arg0: i32, %arg1: i32, %arg2: i32) -> (i32, i32) {
    %c0_i32 = arith.constant 0 : i32
    return %arg0, %arg2 : i32, i32
  }
  func.func @transform_1(%arg0: i32, %arg1: i32, %arg2: i32) -> (i32, i32) {
    %c0_i32 = arith.constant 0 : i32
    return %arg2, %arg1 : i32, i32
  }
  func.func @transform_2(%arg0: i32, %arg1: i32, %arg2: i32) -> (i32, i32) {
    %c0_i32 = arith.constant 0 : i32
    %c0_i32_0 = arith.constant 0 : i32
    return %c0_i32, %arg1 : i32, i32
  }
  func.func @transform_3(%arg0: i32, %arg1: i32, %arg2: i32) -> (i32, i32) {
    %c0_i32 = arith.constant 0 : i32
    return %arg0, %arg1 : i32, i32
  }
}

</mosaic_0001>

<llo_original>
// kernel: _forward.1
$region0: #{_forward.1}
  #allocation0 [shape = 'u32[]', space=smem, size = 0x4, offset = 0x4, fixed_abs, tag = 'smem constant byte address 0x4 - core index']
  #allocation1 [shape = 'u32[144,128]{1,0:T(1,128)}', space=vmem, size = 0x12000, scoped, tag = 'internal scratch']
  #allocation2 [shape = 'f32[8,128]{1,0:T(8,128)}', space=vmem, size = 0x1000, scoped, tag = 'scratch operand']
  %s0 = inlined_call_operand.vmem [shape: f32[16,128], index: 0, kind: input, shape index: {}]
  %s1 = inlined_call_operand.hbm [shape: f32[128,128], index: 1, kind: input, shape index: {}]
  %s2 = inlined_call_operand.vmem [shape: f32[1,128], index: 2, kind: input, shape index: {}]
  %s3 = inlined_call_operand.vmem [shape: f32[16,128], index: 3, kind: output, shape index: {}]
  %s4 = sld [smem:[#allocation0]]
  $region57: #{_forward.1} parent=0
    _
  %s6 = ssub.s32 1, %s4
  %s7 = scalar_select 0, %s6, %s4
  $region1: #{_forward.1} parent=0
    #allocation3 [shape = 'u8[65536]{0}', space=vmem, size = 0x10000, scoped, tag = 'input window, operand 1, single buffered']
    #allocation4 [shape = 's32[2]{0}', space=sflag, size = 0x8, scoped, tag = 'scoped memory for _forward.1']
    %8 = vsyncpa [#allocation4], 0
    loop: start=0, step=1, limit=4
    $region2: #{_forward.1} parent=1 // loop_pre_header
      _
    $region3: #{_forward.1} parent=1 // loop_header
      %s10 = sphi 0, %s14
      %p11 = scmp.ge.s32.totalorder %s10, 4
      %s17 = sphi 0, %s36
      %s18 = sphi 0, %s32
      %s19 = sphi 0, %s28
      %s20 = sphi 0, %s17
      %s21 = sphi 0, %s18
      %s22 = sphi 0, %s19
      %s23 = sphi 0, %s20
      %s24 = sphi 0, %s21
      %s25 = sphi 0, %s22
      %s41 = sphi 0, %s43
      %s44 = sphi 0, %s41
      %s45 = sphi 0, %s44
      %s61 = sphi 0, %s45
      %s69 = sphi 0, %s71
      %s72 = sphi 0, %s69
      %s73 = sphi 0, %s72
      %s89 = sphi 0, %s73
      %s95 = sphi 0, %s97
      %s98 = sphi 0, %s95
      %s99 = sphi 0, %s98
      %s115 = sphi 0, %s99
      %s123 = sphi 0, %s125
      %s126 = sphi 0, %s123
      %s127 = sphi 0, %s126
      %s143 = sphi 0, %s127
    $region4: #{_forward.1} parent=1 // loop_header_branch
      %13 = sbr.rel (%p11) target = $region8
    $region5: #{_forward.1} parent=1 // loop_body
      %s15 = ssub.s32 %s10, 1
      %s16 = ssub.s32 %s10, 2
      %s26 = sadd.s32 1, %s19
      %p27 = scmp.ge.s32.totalorder %s26, 1
      %s28 = scalar_select %p27, 0, %s26
      %s29 = sadd.s32 1, %s18
      %s30 = scalar_select %p27, %s29, %s18
      %p31 = scmp.ge.s32.totalorder %s30, 1
      %s32 = scalar_select %p31, 0, %s30
      %s33 = sadd.s32 1, %s17
      %s34 = scalar_select %p31, %s33, %s17
      %p35 = scmp.ge.s32.totalorder %s34, 2
      %s36 = scalar_select %p35, 0, %s34
      %s37 = ssub.s32 %s17, %s36
      %s38 = ssub.s32 %s19, %s28
      %s39 = sor.u32 %s37, %s38
      %p40 = scmp.eq.s32.totalorder %s39, 0
      %s42 = sadd.s32 %s41, 1
      %s43 = scalar_select %p40, %s41, %s42
      %p46 = pneg %p40
      %p47 = scmp.eq.s32.totalorder %s10, 1
      %p48 = por %p46, %p47
      %p49 = scmp.ne.s32.totalorder %s41, %s44
      %p50 = scmp.eq.s32.totalorder %s10, 0
      %p51 = por %p49, %p50
      %p52 = scmp.ne.s32.totalorder %s41, %s44
      %p53 = scmp.eq.s32.totalorder %s15, 1
      %p54 = por %p52, %p53
      %p55 = scmp.ne.s32.totalorder %s44, %s45
      %p56 = scmp.eq.s32.totalorder %s15, 0
      %p57 = por %p55, %p56
      %p58 = scmp.ne.s32.totalorder %s44, %s45
      %p59 = scmp.eq.s32.totalorder %s16, 1
      %p60 = por %p58, %p59
      %p62 = scmp.ne.s32.totalorder %s45, %s61
      %p63 = scmp.eq.s32.totalorder %s16, 0
      %p64 = por %p62, %p63
      %s65 = ssub.s32 %s19, %s28
      %s66 = ssub.s32 %s18, %s32
      %s67 = sor.u32 %s65, %s66
      %p68 = scmp.eq.s32.totalorder %s67, 0
      %s70 = sadd.s32 %s69, 1
      %s71 = scalar_select %p68, %s69, %s70
      %p74 = pneg %p68
      %p75 = scmp.eq.s32.totalorder %s10, 1
      %p76 = por %p74, %p75
      %p77 = scmp.ne.s32.totalorder %s69, %s72
      %p78 = scmp.eq.s32.totalorder %s10, 0
      %p79 = por %p77, %p78
      %p80 = scmp.ne.s32.totalorder %s69, %s72
      %p81 = scmp.eq.s32.totalorder %s15, 1
      %p82 = por %p80, %p81
      %p83 = scmp.ne.s32.totalorder %s72, %s73
      %p84 = scmp.eq.s32.totalorder %s15, 0
      %p85 = por %p83, %p84
      %p86 = scmp.ne.s32.totalorder %s72, %s73
      %p87 = scmp.eq.s32.totalorder %s16, 1
      %p88 = por %p86, %p87
      %p90 = scmp.ne.s32.totalorder %s73, %s89
      %p91 = scmp.eq.s32.totalorder %s16, 0
      %p92 = por %p90, %p91
      %s93 = ssub.s32 %s18, %s32
      %p94 = scmp.eq.s32.totalorder %s93, 0
      %s96 = sadd.s32 %s95, 1
      %s97 = scalar_select %p94, %s95, %s96
      %p100 = pneg %p94
      %p101 = scmp.eq.s32.totalorder %s10, 1
      %p102 = por %p100, %p101
      %p103 = scmp.ne.s32.totalorder %s95, %s98
      %p104 = scmp.eq.s32.totalorder %s10, 0
      %p105 = por %p103, %p104
      %p106 = scmp.ne.s32.totalorder %s95, %s98
      %p107 = scmp.eq.s32.totalorder %s15, 1
      %p108 = por %p106, %p107
      %p109 = scmp.ne.s32.totalorder %s98, %s99
      %p110 = scmp.eq.s32.totalorder %s15, 0
      %p111 = por %p109, %p110
      %p112 = scmp.ne.s32.totalorder %s98, %s99
      %p113 = scmp.eq.s32.totalorder %s16, 1
      %p114 = por %p112, %p113
      %p116 = scmp.ne.s32.totalorder %s99, %s115
      %p117 = scmp.eq.s32.totalorder %s16, 0
      %p118 = por %p116, %p117
      %s119 = ssub.s32 %s17, %s36
      %s120 = ssub.s32 %s18, %s32
      %s121 = sor.u32 %s119, %s120
      %p122 = scmp.eq.s32.totalorder %s121, 0
      %s124 = sadd.s32 %s123, 1
      %s125 = scalar_select %p122, %s123, %s124
      %p128 = pneg %p122
      %p129 = scmp.eq.s32.totalorder %s10, 1
      %p130 = por %p128, %p129
      %p131 = scmp.ne.s32.totalorder %s123, %s126
      %p132 = scmp.eq.s32.totalorder %s10, 0
      %p133 = por %p131, %p132
      %p134 = scmp.ne.s32.totalorder %s123, %s126
      %p135 = scmp.eq.s32.totalorder %s15, 1
      %p136 = por %p134, %p135
      %p137 = scmp.ne.s32.totalorder %s126, %s127
      %p138 = scmp.eq.s32.totalorder %s15, 0
      %p139 = por %p137, %p138
      %p140 = scmp.ne.s32.totalorder %s126, %s127
      %p141 = scmp.eq.s32.totalorder %s16, 1
      %p142 = por %p140, %p141
      %p144 = scmp.ne.s32.totalorder %s127, %s143
      %p145 = scmp.eq.s32.totalorder %s16, 0
      %p146 = por %p144, %p145
      %p147 = scmp.le.s32.totalorder 1, %s10
      %p148 = scmp.lt.s32.totalorder %s10, 3
      %p149 = pnand %p147, %p148
      %p150 = pneg %p149
      // Predicated region
      $region9: #{_forward.1} parent=5 // pred_check
        _
      $region10: #{_forward.1} parent=5 // pred_check_branch
        %152 = sbr.rel (%p149) target = $region12
      $region11: #{_forward.1} parent=5 // pred_region
        %s153 = ssub.s32 %s10, 1
        // Predicated region
        $region13: #{_forward.1} parent=11 // pred_check
          %p154 = pneg %p85
        $region14: #{_forward.1} parent=11 // pred_check_branch
          %156 = sbr.rel (%p154) target = $region16
        $region15: #{_forward.1} parent=11 // pred_region
          %s157 = smul.u32 16, %s22
          %s159 = ssub.s32 2048, 2048
          %160 = vsyncadd [#allocation4], %s159
          %s161 = sadd.s32 %s21, %s157
          %s162 = smul.addr %s161, 128
          %s163 = scalar_lea.hbm %s1, %s162
          %s164 = sshll.u32 [#allocation3], 4
          %s165 = int_to_ptr.vmem [resolvable:$true] %s164
          %170 = dma.hbm_to_vmem [thread:$0]  %s163, 2048, %s165, [#allocation4], 128, 128, 8
        $region16: #{_forward.1} parent=11 // pred_fallthru
          _
        // Predicated region
        $region17: #{_forward.1} parent=11 // pred_check
          %p171 = pneg %p111
        $region18: #{_forward.1} parent=11 // pred_check_branch
          %173 = sbr.rel (%p171) target = $region20
        $region19: #{_forward.1} parent=11 // pred_region
          %p174 = scmp.lt.s32.totalorder %s21, 0
          %s175 = scalar_select %p174, %s21, 0
          %s176 = scalar_lea.vmem %s2, %s175
        $region20: #{_forward.1} parent=11 // pred_fallthru
          _
      $region12: #{_forward.1} parent=5 // pred_fallthru
        _
      %p177 = scmp.lt.s32.totalorder %s10, 2
      // Predicated region
      $region21: #{_forward.1} parent=5 // pred_check
        %p178 = pneg %p177
      $region22: #{_forward.1} parent=5 // pred_check_branch
        %180 = sbr.rel (%p178) target = $region24
      $region23: #{_forward.1} parent=5 // pred_region
        // Predicated region
        $region25: #{_forward.1} parent=23 // pred_check
          %p181 = pneg %p51
        $region26: #{_forward.1} parent=23 // pred_check_branch
          %183 = sbr.rel (%p181) target = $region28
        $region27: #{_forward.1} parent=23 // pred_region
          %p184 = scmp.lt.s32.totalorder %s17, 1
          %s185 = scalar_select %p184, %s17, 1
          %p186 = scmp.lt.s32.totalorder %s19, 0
          %s187 = scalar_select %p186, %s19, 0
          %s188 = sadd.s32 %s187, %s185
          %s189 = smul.addr %s188, 8
          %s190 = scalar_lea.vmem %s0, %s189
        $region28: #{_forward.1} parent=23 // pred_fallthru
          _
      $region24: #{_forward.1} parent=5 // pred_fallthru
        _
      %p191 = scmp.le.s32.totalorder 1, %s10
      %p192 = scmp.lt.s32.totalorder %s10, 3
      %p193 = pnand %p191, %p192
      %p194 = pneg %p193
      // Predicated region
      $region29: #{_forward.1} parent=5 // pred_check
        _
      $region30: #{_forward.1} parent=5 // pred_check_branch
        %196 = sbr.rel (%p193) target = $region32
      $region31: #{_forward.1} parent=5 // pred_region
        %s197 = ssub.s32 %s10, 1
        // Predicated region
        $region33: #{_forward.1} parent=31 // pred_check
          %p198 = pneg %p85
        $region34: #{_forward.1} parent=31 // pred_check_branch
          %200 = sbr.rel (%p198) target = $region36
        $region35: #{_forward.1} parent=31 // pred_region
          %201 = dma.done [#allocation4], 2048
        $region36: #{_forward.1} parent=31 // pred_fallthru
          _
        %p202 = scmp.lt.s32.totalorder %s20, 1
        %s203 = scalar_select %p202, %s20, 1
        %p204 = scmp.lt.s32.totalorder %s22, 0
        %s205 = scalar_select %p204, %s22, 0
        %s206 = sadd.s32 %s205, %s203
        %s207 = smul.addr %s206, 8
        %s208 = scalar_lea.vmem %s0, %s207
        %p209 = pneg %p57
        %p210 = pneg %p54
        %p211 = pneg %p85
        %p212 = pneg %p82
        %p213 = scmp.lt.s32.totalorder %s21, 0
        %s214 = scalar_select %p213, %s21, 0
        %s215 = scalar_lea.vmem %s2, %s214
        %p216 = pneg %p111
        %p217 = pneg %p108
        %p218 = pneg %p139
        %p219 = pneg %p136
        %p220 = scmp.lt.s32.totalorder %s20, 1
        %s221 = scalar_select %p220, %s20, 1
        %p222 = scmp.lt.s32.totalorder %s21, 0
        %s223 = scalar_select %p222, %s21, 0
        %s224 = sadd.s32 %s223, %s221
        %s225 = smul.addr %s224, 8
        %s226 = scalar_lea.vmem %s3, %s225
        %p227 = scmp.lt.s32.totalorder %s20, 1
        %s228 = scalar_select %p227, %s20, 1
        %p229 = scmp.lt.s32.totalorder %s22, 0
        %s230 = scalar_select %p229, %s22, 0
        %s231 = sadd.s32 %s230, %s228
        %s232 = smul.addr %s231, 8
        %s233 = scalar_lea.vmem %s0, %s232
        %s234 = smul.u32 16, %s22
        %p235 = scmp.lt.s32.totalorder %s21, 0
        %s236 = scalar_select %p235, %s21, 0
        %s237 = scalar_lea.vmem %s2, %s236
        %p238 = scmp.lt.s32.totalorder %s20, 1
        %s239 = scalar_select %p238, %s20, 1
        %p240 = scmp.lt.s32.totalorder %s21, 0
        %s241 = scalar_select %p240, %s21, 0
        %s242 = sadd.s32 %s241, %s239
        %s243 = smul.addr %s242, 8
        %s244 = scalar_lea.vmem %s3, %s243
        %p245 = scmp.eq.s32.totalorder %s22, 0
        // Predicated region
        $region37: #{_forward.1} parent=31 // pred_check
          %p246 = pneg %p245
        $region38: #{_forward.1} parent=31 // pred_check_branch
          %248 = sbr.rel (%p246) target = $region40
        $region39: #{_forward.1} parent=31 // pred_region
          %249 = vst [vmem:[#allocation2] sm:$0xff] 0.0
        $region40: #{_forward.1} parent=31 // pred_fallthru
          _
        %v250 = vld [vmem:[#allocation2] sm:$0xff]
        %v251 = vld [vmem:[%s233] sm:$0xff]
        %v252 = vld [vmem:[#allocation3] sm:$0xff]
        %v253 = vld [vmem:[#allocation3 + $0x8] sm:$0xff]
        %v254 = vld [vmem:[#allocation3 + $0x10] sm:$0xff]
        %v255 = vld [vmem:[#allocation3 + $0x18] sm:$0xff]
        %v256 = vld [vmem:[#allocation3 + $0x20] sm:$0xff]
        %v257 = vld [vmem:[#allocation3 + $0x28] sm:$0xff]
        %v258 = vld [vmem:[#allocation3 + $0x30] sm:$0xff]
        %v259 = vld [vmem:[#allocation3 + $0x38] sm:$0xff]
        %v260 = vld [vmem:[#allocation3 + $0x40] sm:$0xff]
        %v261 = vld [vmem:[#allocation3 + $0x48] sm:$0xff]
        %v262 = vld [vmem:[#allocation3 + $0x50] sm:$0xff]
        %v263 = vld [vmem:[#allocation3 + $0x58] sm:$0xff]
        %v264 = vld [vmem:[#allocation3 + $0x60] sm:$0xff]
        %v265 = vld [vmem:[#allocation3 + $0x68] sm:$0xff]
        %v266 = vld [vmem:[#allocation3 + $0x70] sm:$0xff]
        %v267 = vld [vmem:[#allocation3 + $0x78] sm:$0xff]
        %268 = vmatprep.subr.mxu0 0.0
        %269 = vmatpush1.msra.mxu0 %v267
        %270 = vmatprep.subr.mxu0 0.0
        %271 = vmatpush1.msra.mxu0 %v266
        %272 = vmatprep.subr.mxu0 0.0
        %273 = vmatpush1.msra.mxu0 %v265
        %274 = vmatprep.subr.mxu0 0.0
        %275 = vmatpush1.msra.mxu0 %v264
        %276 = vmatprep.subr.mxu0 0.0
        %277 = vmatpush1.msra.mxu0 %v263
        %278 = vmatprep.subr.mxu0 0.0
        %279 = vmatpush1.msra.mxu0 %v262
        %280 = vmatprep.subr.mxu0 0.0
        %281 = vmatpush1.msra.mxu0 %v261
        %282 = vmatprep.subr.mxu0 0.0
        %283 = vmatpush1.msra.mxu0 %v260
        %284 = vmatprep.subr.mxu0 0.0
        %285 = vmatpush1.msra.mxu0 %v259
        %286 = vmatprep.subr.mxu0 0.0
        %287 = vmatpush1.msra.mxu0 %v258
        %288 = vmatprep.subr.mxu0 0.0
        %289 = vmatpush1.msra.mxu0 %v257
        %290 = vmatprep.subr.mxu0 0.0
        %291 = vmatpush1.msra.mxu0 %v256
        %292 = vmatprep.subr.mxu0 0.0
        %293 = vmatpush1.msra.mxu0 %v255
        %294 = vmatprep.subr.mxu0 0.0
        %295 = vmatpush1.msra.mxu0 %v254
        %296 = vmatprep.subr.mxu0 0.0
        %297 = vmatpush1.msra.mxu0 %v253
        %298 = vmatprep.subr.mxu0 0.0
        %299 = vmatpush1.msra.mxu0 %v252
        %300 = vmatprep.subr.mxu0 0.0
        %301 = vmatpush2.msra.mxu0 0.0
        %302 = vmatprep.subr.mxu0 0.0
        %303 = vmatpush2.msra.mxu0 0.0
        %304 = vmatprep.subr.mxu0 0.0
        %305 = vmatpush2.msra.mxu0 0.0
        %306 = vmatprep.subr.mxu0 0.0
        %307 = vmatpush2.msra.mxu0 0.0
        %308 = vmatprep.subr.mxu0 0.0
        %309 = vmatpush2.msra.mxu0 0.0
        %310 = vmatprep.subr.mxu0 0.0
        %311 = vmatpush2.msra.mxu0 0.0
        %312 = vmatprep.subr.mxu0 0.0
        %313 = vmatpush2.msra.mxu0 0.0
        %314 = vmatprep.subr.mxu0 0.0
        %315 = vmatpush2.msra.mxu0 0.0
        %316 = vmatprep.subr.mxu0 0.0
        %317 = vmatpush2.msra.mxu0 0.0
        %318 = vmatprep.subr.mxu0 0.0
        %319 = vmatpush2.msra.mxu0 0.0
        %320 = vmatprep.subr.mxu0 0.0
        %321 = vmatpush2.msra.mxu0 0.0
        %322 = vmatprep.subr.mxu0 0.0
        %323 = vmatpush2.msra.mxu0 0.0
        %324 = vmatprep.subr.mxu0 0.0
        %325 = vmatpush2.msra.mxu0 0.0
        %326 = vmatprep.subr.mxu0 0.0
        %327 = vmatpush2.msra.mxu0 0.0
        %328 = vmatprep.subr.mxu0 0.0
        %329 = vmatpush2.msra.mxu0 0.0
        %330 = vmatprep.subr.mxu0 0.0
        %331 = vmatpush2.msra.mxu0 0.0
        %332 = vmatprep.mubr.f32.mxu0 0.0
        %333 = vmatmul.mubr.f32.gmra.mxu0 %v251
        %v334 = vpop.f32.mrf.mxu0
        %v335 = vadd.f32 0.0, %v334
        %v336 = vpop.f32.mrf.mxu0
        %337 = vdwg.mxu0
        %v338 = vadd.f32 %v250, %v335
        %339 = vst [vmem:[#allocation2] sm:$0xff] %v338
        // Predicated region
        $region41: #{_forward.1} parent=31 // pred_check
          %p340 = pneg %p245
        $region42: #{_forward.1} parent=31 // pred_check_branch
          %342 = sbr.rel (%p340) target = $region44
        $region43: #{_forward.1} parent=31 // pred_region
          %v343 = vld [vmem:[#allocation2] sm:$0xff]
          %v344 = vld [vmem:[%s237] sm:$0x1]
          %v346 = vlaneseq
          %v347 = vshrl.u32 %v346, 7
          %v348 = vsub.s32 0, %v347
          %v349 = vrot.slane %v344, %v348
          %v351 = vadd.f32 %v343, %v349
          %352 = vst [vmem:[%s244] sm:$0xff] %v351
        $region44: #{_forward.1} parent=31 // pred_fallthru
          _
        %p353 = scmp.lt.s32.totalorder %s20, 1
        %s354 = scalar_select %p353, %s20, 1
        %p355 = scmp.lt.s32.totalorder %s21, 0
        %s356 = scalar_select %p355, %s21, 0
        %s357 = sadd.s32 %s356, %s354
        %s358 = smul.addr %s357, 8
        %s359 = scalar_lea.vmem %s3, %s358
        // Predicated region
        $region45: #{_forward.1} parent=31 // pred_check
          %p360 = pneg %p136
        $region46: #{_forward.1} parent=31 // pred_check_branch
          %362 = sbr.rel (%p360) target = $region48
        $region47: #{_forward.1} parent=31 // pred_region
          _
        $region48: #{_forward.1} parent=31 // pred_fallthru
          _
      $region32: #{_forward.1} parent=5 // pred_fallthru
        _
      %p363 = scmp.le.s32.totalorder 2, %s10
      // Predicated region
      $region49: #{_forward.1} parent=5 // pred_check
        %p364 = pneg %p363
      $region50: #{_forward.1} parent=5 // pred_check_branch
        %366 = sbr.rel (%p364) target = $region52
      $region51: #{_forward.1} parent=5 // pred_region
        %s367 = ssub.s32 %s10, 2
        // Predicated region
        $region53: #{_forward.1} parent=51 // pred_check
          %p368 = pneg %p142
        $region54: #{_forward.1} parent=51 // pred_check_branch
          %370 = sbr.rel (%p368) target = $region56
        $region55: #{_forward.1} parent=51 // pred_region
          %p371 = scmp.lt.s32.totalorder %s23, 1
          %s372 = scalar_select %p371, %s23, 1
          %p373 = scmp.lt.s32.totalorder %s24, 0
          %s374 = scalar_select %p373, %s24, 0
          %s375 = sadd.s32 %s374, %s372
          %s376 = smul.addr %s375, 8
          %s377 = scalar_lea.vmem %s3, %s376
        $region56: #{_forward.1} parent=51 // pred_fallthru
          _
      $region52: #{_forward.1} parent=5 // pred_fallthru
        _
    $region6: #{_forward.1} parent=1 // loop_footer
      %s14 = sadd.s32 1, %s10
    $region7: #{_forward.1} parent=1 // loop_footer_branch
      %9 = sbr.rel target = $region3
    $region8: #{_forward.1} parent=1 // loop_exit
      _
    %378 = vsyncpa [#allocation4], 1
    %s379 = scalar_lea.sflag [#allocation4], 1
    %380 = vsyncpa %s379, 1

</llo_original>
